<compile_context>
chip_gen: v7x
topology: tpu7x:2x2x1
jax: 0.10.0
libtpu: 0.0.40
codegen_flags: <defaults>
</compile_context>

<pallas_src>
import jax
import jax.numpy as jnp
from jax.experimental import pallas as pl
from jax.experimental.pallas import tpu as pltpu


def _encoder_identity_kernel(x_ref, o_ref):
    # The output buffer is aliased to the input buffer and both stay in
    # pl.ANY (HBM) memory space: the identity requires no data movement,
    # so the body intentionally performs no loads/stores.
    del x_ref, o_ref


def encoder_forward(x):
    """Pallas 'forward' for the abstract base Encoder: identity on X.

    Zero HBM traffic inside the kernel: the output aliases the input buffer
    and the kernel moves no data.  For a true zero-copy call site, donate X:

        fwd = jax.jit(encoder_forward, donate_argnums=0)
        y = fwd(x)            # x's buffer is reused as y

    Without donation, XLA inserts one defensive copy to satisfy the alias;
    the result is still bitwise identical to X.  Works for any shape/dtype.
    """
    return pl.pallas_call(
        _encoder_identity_kernel,
        out_shape=jax.ShapeDtypeStruct(x.shape, x.dtype),
        in_specs=[pl.BlockSpec(memory_space=pl.ANY)],
        out_specs=pl.BlockSpec(memory_space=pl.ANY),
        input_output_aliases={0: 0},
        compiler_params=pltpu.CompilerParams(has_side_effects=True),
    )(x)


if __name__ == "__main__":
    key = jax.random.PRNGKey(0)
    # Small shapes consistent with a seq2seq encoder input: batch=2, seq=8, hidden=32.
    B, S, D = 2, 8, 32
    x = jax.random.normal(key, (B, S, D), dtype=jnp.float32)

    # Un-donated call: XLA inserts a defensive copy for the alias, so x stays valid.
    y = jax.block_until_ready(encoder_forward(x))
    assert y.shape == x.shape and y.dtype == x.dtype
    assert bool(jnp.all(y == x))

    # Non-128-divisible / odd shape: memory_space=pl.ANY means there is no
    # (8,128) tiling constraint and no VMEM ceiling to worry about.
    x_odd = jax.random.normal(jax.random.PRNGKey(1), (2, 8, 33), dtype=jnp.float32)
    y_odd = jax.block_until_ready(encoder_forward(x_odd))
    assert y_odd.shape == x_odd.shape and y_odd.dtype == x_odd.dtype
    assert bool(jnp.all(y_odd == x_odd))

    # Donated call: the documented zero-copy contract (review item 2).
    donated_fwd = jax.jit(encoder_forward, donate_argnums=0)
    x_don = jax.random.normal(jax.random.PRNGKey(2), (B, S, D), dtype=jnp.float32)
    x_don_copy = x_don.copy()  # keep reference data; x_don's buffer is donated
    y_don = jax.block_until_ready(donated_fwd(x_don))
    assert y_don.shape == x_don_copy.shape and y_don.dtype == x_don_copy.dtype
    assert bool(jnp.all(y_don == x_don_copy))

    print("KERNEL_OK")
</pallas_src>

<mosaic_0001>
module attributes {stable_mosaic.version = 11 : i64} {
  func.func @_encoder_identity_kernel(%arg0: memref<2x8x32xf32, #tpu.memory_space<any>>, %arg1: memref<2x8x32xf32, #tpu.memory_space<any>>) attributes {dimension_semantics = [], scalar_prefetch = 0 : i64, scratch_operands = 0 : i64, tpu.core_type = #tpu.core_type<tc>} {
    return
  }
}

</mosaic_0001>

<llo_original>
// kernel: tpu_custom_call.1
$region0: #{tpu_custom_call.1}
  #allocation0 [shape = 'u32[]', space=smem, size = 0x4, offset = 0x4, fixed_abs, tag = 'smem constant byte address 0x4 - core index']
  #allocation1 [shape = 'u32[144,128]{1,0:T(1,128)}', space=vmem, size = 0x12000, scoped, tag = 'internal scratch']
  %s0 = inlined_call_operand.hbm [shape: f32[2,8,32], index: 0, kind: input, shape index: {}, may-alias: {0,1}]
  %s1 = inlined_call_operand.hbm [shape: f32[2,8,32], index: 1, kind: output, shape index: {}, may-alias: {0,1}]
  %s2 = sld [smem:[#allocation0]]
  $region2: #{tpu_custom_call.1} parent=0
    _
  %s4 = ssub.s32 1, %s2
  %s5 = scalar_select 0, %s4, %s2

</llo_original>
